<compile_context>
chip_gen: v7x
topology: tpu7x:2x2x1
jax: 0.10.0
libtpu: 0.0.40
codegen_flags: <defaults>
</compile_context>

<pallas_src>
import jax
import jax.numpy as jnp
from jax.experimental import pallas as pl
from jax.experimental.pallas import tpu as pltpu

EPS = 1e-5
_TARGET_TILE_BYTES = 2 * 1024 * 1024  # ~2 MiB per buffer; safe with double
                                      # buffering on v5e/v6e/v7x scoped VMEM.


def _stats_kernel(x_ref, sum_ref, sq_ref, acc_sum, acc_sq):
    """Pass 1: per-row (packed-channel) sum and sum of squares.

    x_ref:   (TBT, CR, L)  input tile
    sum_ref: (CR, 1) f32   output (written once, at the last grid step)
    sq_ref:  (CR, 1) f32   output
    acc_*:   (CR, L) f32   VMEM scratch accumulators (persist across grid steps)
    """
    i = pl.program_id(0)

    @pl.when(i == 0)
    def _():
        acc_sum[...] = jnp.zeros_like(acc_sum)
        acc_sq[...] = jnp.zeros_like(acc_sq)

    x = x_ref[...].astype(jnp.float32)
    # Reduce only over the leading (tile) axis: pure VALU adds, no XLU per tile.
    acc_sum[...] += jnp.sum(x, axis=0)
    acc_sq[...] += jnp.sum(x * x, axis=0)

    @pl.when(i == pl.num_programs(0) - 1)
    def _():
        # Single cross-lane reduce, once per pass.
        sum_ref[...] = jnp.sum(acc_sum[...], axis=1, keepdims=True)
        sq_ref[...] = jnp.sum(acc_sq[...], axis=1, keepdims=True)


def _normalize_kernel(x_ref, scale_ref, shift_ref, o_ref):
    """Pass 2: y = x * scale + shift (affine folded into per-row scalars)."""
    x = x_ref[...].astype(jnp.float32)
    o_ref[...] = (x * scale_ref[...] + shift_ref[...]).astype(o_ref.dtype)


def _pack_factor(C, HW):
    """Rows-per-channel R so C*R fills sublanes and HW/R stays a 128 multiple."""
    for r in (8, 4, 2):
        if (C * r) % 8 == 0 and HW % r == 0 and (HW // r) % 128 == 0:
            return r
    return 1


def _tb_tile(TB, row_bytes):
    """Largest divisor of TB whose tile stays under the VMEM budget."""
    t = max(1, min(TB, _TARGET_TILE_BYTES // max(row_bytes, 1)))
    while TB % t != 0:  # exact tiles: no masking needed in the stats pass
        t -= 1
    return t


def my_batchnorm3d_spiking(x, gamma, beta):
    """x: [T, B, C, H, W]; gamma, beta: [C]. Returns [T, B, C, H, W]."""
    T, B, C, H, W = x.shape
    TB, HW = T * B, H * W
    R = _pack_factor(C, HW)
    CR, L = C * R, HW // R
    n = TB * HW  # elements per channel

    # Free, metadata-only reshape of the native layout (no transpose).
    x_flat = x.reshape(TB, CR, L)

    tbt = _tb_tile(TB, CR * L * x.dtype.itemsize)
    grid = (TB // tbt,)

    # ---- pass 1: per-row sum / sum-of-squares (sequential accumulation) ----
    row_sum, row_sq = pl.pallas_call(
        _stats_kernel,
        out_shape=(jax.ShapeDtypeStruct((CR, 1), jnp.float32),
                   jax.ShapeDtypeStruct((CR, 1), jnp.float32)),
        grid=grid,
        in_specs=[pl.BlockSpec((tbt, CR, L), lambda i: (i, 0, 0))],
        out_specs=(pl.BlockSpec((CR, 1), lambda i: (0, 0)),
                   pl.BlockSpec((CR, 1), lambda i: (0, 0))),
        scratch_shapes=[pltpu.VMEM((CR, L), jnp.float32),
                        pltpu.VMEM((CR, L), jnp.float32)],
        compiler_params=pltpu.CompilerParams(
            dimension_semantics=("arbitrary",)),
    )(x_flat)

    # ---- fold stats + affine into per-row scale/shift (C-sized, negligible) --
    sum_c = row_sum.reshape(C, R).sum(axis=1)
    sq_c = row_sq.reshape(C, R).sum(axis=1)
    mean = sum_c / n
    var = jnp.maximum(sq_c / n - mean * mean, 0.0)  # biased var; clamp cancellation
    scale = gamma.astype(jnp.float32) * jax.lax.rsqrt(var + EPS)
    shift = beta.astype(jnp.float32) - mean * scale
    scale_rows = jnp.repeat(scale, R).reshape(CR, 1)
    shift_rows = jnp.repeat(shift, R).reshape(CR, 1)

    # ---- pass 2: streaming normalize (embarrassingly parallel) --------------
    out_flat = pl.pallas_call(
        _normalize_kernel,
        out_shape=jax.ShapeDtypeStruct((TB, CR, L), x.dtype),
        grid=grid,
        in_specs=[pl.BlockSpec((tbt, CR, L), lambda i: (i, 0, 0)),
                  pl.BlockSpec((CR, 1), lambda i: (0, 0)),
                  pl.BlockSpec((CR, 1), lambda i: (0, 0))],
        out_specs=pl.BlockSpec((tbt, CR, L), lambda i: (i, 0, 0)),
        compiler_params=pltpu.CompilerParams(
            dimension_semantics=("parallel",)),
    )(x_flat, scale_rows, shift_rows)

    # Free reshape back to the native layout.
    return out_flat.reshape(T, B, C, H, W)


def _reference(x, gamma, beta):
    """Pure-JAX reference of training-mode BatchNorm3d over the channel axis."""
    T, B, C, H, W = x.shape
    xc = jnp.transpose(x, (2, 0, 1, 3, 4)).reshape(C, -1).astype(jnp.float32)
    mean = xc.mean(axis=1, keepdims=True)
    var = ((xc - mean) ** 2).mean(axis=1, keepdims=True)
    y = (xc - mean) / jnp.sqrt(var + EPS) * gamma[:, None] + beta[:, None]
    y = y.reshape(C, T, B, H, W)
    return jnp.transpose(y, (1, 2, 0, 3, 4)).astype(x.dtype)


if __name__ == "__main__":
    # small shapes consistent with the module: step(T)=2, batch=2, channels=4, 16x16
    T, B, C, H, W = 2, 2, 4, 16, 16
    key = jax.random.PRNGKey(0)
    x = jax.random.normal(key, (T, B, C, H, W), dtype=jnp.float32)

    # deterministic affine params (nn.BatchNorm3d(C) has weight[C], bias[C])
    gamma = 1.0 + 0.1 * jnp.arange(C, dtype=jnp.float32)
    beta = 0.05 * jnp.arange(C, dtype=jnp.float32)

    out = jax.block_until_ready(my_batchnorm3d_spiking(x, gamma, beta))
    ref = _reference(x, gamma, beta)

    assert out.shape == (T, B, C, H, W)
    err = float(jnp.max(jnp.abs(out.astype(jnp.float32) - ref.astype(jnp.float32))))
    assert err < 1e-3, f"mismatch vs reference: {err}"

    print("KERNEL_OK")
</pallas_src>

<mosaic_0001>
module attributes {stable_mosaic.version = 11 : i64} {
  func.func @_stats_kernel(%arg0: i32, %arg1: memref<4x8x128xf32, #tpu.memory_space<vmem>>, %arg2: memref<8x1xf32, #tpu.memory_space<vmem>>, %arg3: memref<8x1xf32, #tpu.memory_space<vmem>>, %arg4: memref<8x128xf32, #tpu.memory_space<vmem>>, %arg5: memref<8x128xf32, #tpu.memory_space<vmem>>) attributes {dimension_semantics = [#tpu.dimension_semantics<arbitrary>], iteration_bounds = array<i64: 1>, scalar_prefetch = 0 : i64, scratch_operands = 2 : i64, tpu.core_type = #tpu.core_type<tc>, window_params = [{transform_indices = @transform_0, window_bounds = array<i64: 4, 8, 128>}, {pipeline_mode = #tpu.pipeline_mode<synchronous>, transform_indices = @transform_1, window_bounds = array<i64: 8, 1>}, {pipeline_mode = #tpu.pipeline_mode<synchronous>, transform_indices = @transform_2, window_bounds = array<i64: 8, 1>}]} {
    %c0_i32 = arith.constant 0 : i32
    %0 = arith.cmpi eq, %arg0, %c0_i32 : i32
    %1 = arith.extui %0 : i1 to i32
    %c0_i32_0 = arith.constant 0 : i32
    %2 = arith.cmpi ne, %1, %c0_i32_0 : i32
    scf.if %2 {
      %cst_14 = arith.constant 0.000000e+00 : f32
      %16 = vector.broadcast %cst_14 : f32 to vector<8x128xf32>
      %c0_15 = arith.constant 0 : index
      %c0_16 = arith.constant 0 : index
      %17 = vector.load %arg4[%c0_15, %c0_16] : memref<8x128xf32, #tpu.memory_space<vmem>>, vector<8x128xf32>
      tpu.vector_store %arg4[%c0_15, %c0_16], %16 {strides = array<i32>} : memref<8x128xf32, #tpu.memory_space<vmem>>, vector<8x128xf32>,
      %cst_17 = arith.constant 0.000000e+00 : f32
      %18 = vector.broadcast %cst_17 : f32 to vector<8x128xf32>
      %c0_18 = arith.constant 0 : index
      %c0_19 = arith.constant 0 : index
      %19 = vector.load %arg5[%c0_18, %c0_19] : memref<8x128xf32, #tpu.memory_space<vmem>>, vector<8x128xf32>
      tpu.vector_store %arg5[%c0_18, %c0_19], %18 {strides = array<i32>} : memref<8x128xf32, #tpu.memory_space<vmem>>, vector<8x128xf32>,
    } else {
    }
    %c0 = arith.constant 0 : index
    %c0_1 = arith.constant 0 : index
    %c0_2 = arith.constant 0 : index
    %3 = vector.load %arg1[%c0, %c0_1, %c0_2] : memref<4x8x128xf32, #tpu.memory_space<vmem>>, vector<4x8x128xf32>
    %c0_3 = arith.constant 0 : index
    %c0_4 = arith.constant 0 : index
    %4 = vector.load %arg4[%c0_3, %c0_4] : memref<8x128xf32, #tpu.memory_space<vmem>>, vector<8x128xf32>
    %cst = arith.constant dense<0.000000e+00> : vector<8x128xf32>
    %5 = vector.multi_reduction <add>, %3, %cst [0] : vector<4x8x128xf32> to vector<8x128xf32>
    %6 = arith.addf %4, %5 : vector<8x128xf32>
    %c0_5 = arith.constant 0 : index
    %c0_6 = arith.constant 0 : index
    %7 = vector.load %arg4[%c0_5, %c0_6] : memref<8x128xf32, #tpu.memory_space<vmem>>, vector<8x128xf32>
    tpu.vector_store %arg4[%c0_5, %c0_6], %6 {strides = array<i32>} : memref<8x128xf32, #tpu.memory_space<vmem>>, vector<8x128xf32>,
    %c0_7 = arith.constant 0 : index
    %c0_8 = arith.constant 0 : index
    %8 = vector.load %arg5[%c0_7, %c0_8] : memref<8x128xf32, #tpu.memory_space<vmem>>, vector<8x128xf32>
    %9 = arith.mulf %3, %3 : vector<4x8x128xf32>
    %cst_9 = arith.constant dense<0.000000e+00> : vector<8x128xf32>
    %10 = vector.multi_reduction <add>, %9, %cst_9 [0] : vector<4x8x128xf32> to vector<8x128xf32>
    %11 = arith.addf %8, %10 : vector<8x128xf32>
    %c0_10 = arith.constant 0 : index
    %c0_11 = arith.constant 0 : index
    %12 = vector.load %arg5[%c0_10, %c0_11] : memref<8x128xf32, #tpu.memory_space<vmem>>, vector<8x128xf32>
    tpu.vector_store %arg5[%c0_10, %c0_11], %11 {strides = array<i32>} : memref<8x128xf32, #tpu.memory_space<vmem>>, vector<8x128xf32>,
    %c0_i32_12 = arith.constant 0 : i32
    %13 = arith.cmpi eq, %arg0, %c0_i32_12 : i32
    %14 = arith.extui %13 : i1 to i32
    %c0_i32_13 = arith.constant 0 : i32
    %15 = arith.cmpi ne, %14, %c0_i32_13 : i32
    scf.if %15 {
      %c0_14 = arith.constant 0 : index
      %c0_15 = arith.constant 0 : index
      %16 = vector.load %arg4[%c0_14, %c0_15] : memref<8x128xf32, #tpu.memory_space<vmem>>, vector<8x128xf32>
      %cst_16 = arith.constant dense<0.000000e+00> : vector<8xf32>
      %17 = vector.multi_reduction <add>, %16, %cst_16 [1] : vector<8x128xf32> to vector<8xf32>
      %18 = vector.shape_cast %17 : vector<8xf32> to vector<8x1xf32>
      %c0_17 = arith.constant 0 : index
      %c0_18 = arith.constant 0 : index
      %19 = vector.load %arg2[%c0_17, %c0_18] : memref<8x1xf32, #tpu.memory_space<vmem>>, vector<8x1xf32>
      tpu.vector_store %arg2[%c0_17, %c0_18], %18 {strides = array<i32>} : memref<8x1xf32, #tpu.memory_space<vmem>>, vector<8x1xf32>,
      %c0_19 = arith.constant 0 : index
      %c0_20 = arith.constant 0 : index
      %20 = vector.load %arg5[%c0_19, %c0_20] : memref<8x128xf32, #tpu.memory_space<vmem>>, vector<8x128xf32>
      %cst_21 = arith.constant dense<0.000000e+00> : vector<8xf32>
      %21 = vector.multi_reduction <add>, %20, %cst_21 [1] : vector<8x128xf32> to vector<8xf32>
      %22 = vector.shape_cast %21 : vector<8xf32> to vector<8x1xf32>
      %c0_22 = arith.constant 0 : index
      %c0_23 = arith.constant 0 : index
      %23 = vector.load %arg3[%c0_22, %c0_23] : memref<8x1xf32, #tpu.memory_space<vmem>>, vector<8x1xf32>
      tpu.vector_store %arg3[%c0_22, %c0_23], %22 {strides = array<i32>} : memref<8x1xf32, #tpu.memory_space<vmem>>, vector<8x1xf32>,
    } else {
    }
    return
  }
  func.func @transform_0(%arg0: i32) -> (i32, i32, i32) {
    %c0_i32 = arith.constant 0 : i32
    %c0_i32_0 = arith.constant 0 : i32
    %c0_i32_1 = arith.constant 0 : i32
    return %arg0, %c0_i32, %c0_i32_0 : i32, i32, i32
  }
  func.func @transform_1(%arg0: i32) -> (i32, i32) {
    %c0_i32 = arith.constant 0 : i32
    %c0_i32_0 = arith.constant 0 : i32
    %c0_i32_1 = arith.constant 0 : i32
    return %c0_i32, %c0_i32_0 : i32, i32
  }
  func.func @transform_2(%arg0: i32) -> (i32, i32) {
    %c0_i32 = arith.constant 0 : i32
    %c0_i32_0 = arith.constant 0 : i32
    %c0_i32_1 = arith.constant 0 : i32
    return %c0_i32, %c0_i32_0 : i32, i32
  }
}

</mosaic_0001>

<llo_original>
// kernel: tpu_custom_call.1
$region0: #{tpu_custom_call.1}
  #allocation0 [shape = 'u32[]', space=smem, size = 0x4, offset = 0x4, fixed_abs, tag = 'smem constant byte address 0x4 - core index']
  #allocation1 [shape = 'u32[144,128]{1,0:T(1,128)}', space=vmem, size = 0x12000, scoped, tag = 'internal scratch']
  #allocation2 [shape = 'f32[8,128]{1,0:T(8,128)}', space=vmem, size = 0x1000, scoped, tag = 'scratch operand']
  #allocation3 [shape = 'f32[8,128]{1,0:T(8,128)}', space=vmem, size = 0x1000, scoped, tag = 'scratch operand']
  %s0 = inlined_call_operand.hbm [shape: f32[4,8,128], index: 0, kind: input, shape index: {}]
  %s1 = inlined_call_operand.vmem [shape: f32[8,1], index: 1, kind: output, shape index: {0}]
  %s2 = inlined_call_operand.vmem [shape: f32[8,1], index: 2, kind: output, shape index: {1}]
  %3 = xla_tuple %s1, %s2
  %s4 = sld [smem:[#allocation0]]
  $region34: #{tpu_custom_call.1} parent=0
    _
  %s6 = ssub.s32 1, %s4
  %s7 = scalar_select 0, %s6, %s4
  $region1: #{tpu_custom_call.1} parent=0
    #allocation4 [shape = 'u8[16384]{0}', space=vmem, size = 0x4000, scoped, tag = 'input window, operand 0, single buffered']
    #allocation5 [shape = 's32[1]{0}', space=sflag, size = 0x4, scoped, tag = 'scoped memory for tpu_custom_call.1']
    %8 = vsyncpa [#allocation5], 0
    // Predicated region
    $region2: #{tpu_custom_call.1} parent=1 // pred_check
      _
    $region3: #{tpu_custom_call.1} parent=1 // pred_check_branch
      %10 = sbr.rel (0) target = $region5
    $region4: #{tpu_custom_call.1} parent=1 // pred_region
      %s12 = ssub.s32 512, 512
      %13 = vsyncadd [#allocation5], %s12
      %s14 = sshll.u32 [#allocation4], 4
      %s15 = int_to_ptr.vmem [resolvable:$true] %s14
      %20 = dma.hbm_to_vmem [thread:$0]  %s0, 512, %s15, [#allocation5], 128, 128, 8
    $region5: #{tpu_custom_call.1} parent=1 // pred_fallthru
      _
    // Predicated region
    $region6: #{tpu_custom_call.1} parent=1 // pred_check
      _
    $region7: #{tpu_custom_call.1} parent=1 // pred_check_branch
      %22 = sbr.rel (0) target = $region9
    $region8: #{tpu_custom_call.1} parent=1 // pred_region
      %23 = dma.done [#allocation5], 512
    $region9: #{tpu_custom_call.1} parent=1 // pred_fallthru
      _
    %p24 = scmp.eq.s32.totalorder 0, 0
    // Predicated region
    $region10: #{tpu_custom_call.1} parent=1 // pred_check
      %p25 = pneg %p24
    $region11: #{tpu_custom_call.1} parent=1 // pred_check_branch
      %27 = sbr.rel (%p25) target = $region13
    $region12: #{tpu_custom_call.1} parent=1 // pred_region
      %28 = vst [vmem:[#allocation2] sm:$0xff] 0.0
      %29 = vst [vmem:[#allocation3] sm:$0xff] 0.0
    $region13: #{tpu_custom_call.1} parent=1 // pred_fallthru
      _
    %v30 = vld [vmem:[#allocation4] sm:$0xff]
    %v31 = vld [vmem:[#allocation4 + $0x8] sm:$0xff]
    %v32 = vld [vmem:[#allocation4 + $0x10] sm:$0xff]
    %v33 = vld [vmem:[#allocation4 + $0x18] sm:$0xff]
    %v34 = vld [vmem:[#allocation2] sm:$0xff]
    %v35 = vadd.f32 %v30, %v31
    %v36 = vadd.f32 %v35, %v32
    %v37 = vadd.f32 %v36, %v33
    %v38 = vadd.f32 %v34, %v37
    %39 = vst [vmem:[#allocation2] sm:$0xff] %v38
    %v40 = vld [vmem:[#allocation3] sm:$0xff]
    %v41 = vmul.f32 %v30, %v30
    %v42 = vmul.f32 %v31, %v31
    %v43 = vmul.f32 %v32, %v32
    %v44 = vmul.f32 %v33, %v33
    %v45 = vadd.f32 %v41, %v42
    %v46 = vadd.f32 %v45, %v43
    %v47 = vadd.f32 %v46, %v44
    %v48 = vadd.f32 %v40, %v47
    %49 = vst [vmem:[#allocation3] sm:$0xff] %v48
    // Predicated region
    $region14: #{tpu_custom_call.1} parent=1 // pred_check
      %p50 = pneg %p24
    $region15: #{tpu_custom_call.1} parent=1 // pred_check_branch
      %52 = sbr.rel (%p50) target = $region17
    $region16: #{tpu_custom_call.1} parent=1 // pred_region
      %v53 = vld [vmem:[#allocation2] sm:$0xff]
      %54 = vadd.xlane.f32.xlu0 %v53
      %v55 = vpop.xlane.xlu0 %54
      %vm56 = vcmask 7168
      %57 = vst.msk [vmem:[%s1] sm:$0xff] %vm56, %v55
      %v58 = vld [vmem:[#allocation3] sm:$0xff]
      %59 = vadd.xlane.f32.xlu0 %v58
      %v60 = vpop.xlane.xlu0 %59
      %61 = vst.msk [vmem:[%s2] sm:$0xff] %vm56, %v60
    $region17: #{tpu_custom_call.1} parent=1 // pred_fallthru
      _
    // Predicated region
    $region18: #{tpu_custom_call.1} parent=1 // pred_check
      _
    $region19: #{tpu_custom_call.1} parent=1 // pred_check_branch
      %63 = sbr.rel (0) target = $region21
    $region20: #{tpu_custom_call.1} parent=1 // pred_region
      _
    $region21: #{tpu_custom_call.1} parent=1 // pred_fallthru
      _
    // Predicated region
    $region22: #{tpu_custom_call.1} parent=1 // pred_check
      _
    $region23: #{tpu_custom_call.1} parent=1 // pred_check_branch
      %65 = sbr.rel (0) target = $region25
    $region24: #{tpu_custom_call.1} parent=1 // pred_region
      _
    $region25: #{tpu_custom_call.1} parent=1 // pred_fallthru
      _
    // Predicated region
    $region26: #{tpu_custom_call.1} parent=1 // pred_check
      _
    $region27: #{tpu_custom_call.1} parent=1 // pred_check_branch
      %67 = sbr.rel (0) target = $region29
    $region28: #{tpu_custom_call.1} parent=1 // pred_region
      _
    $region29: #{tpu_custom_call.1} parent=1 // pred_fallthru
      _
    // Predicated region
    $region30: #{tpu_custom_call.1} parent=1 // pred_check
      _
    $region31: #{tpu_custom_call.1} parent=1 // pred_check_branch
      %69 = sbr.rel (0) target = $region33
    $region32: #{tpu_custom_call.1} parent=1 // pred_region
      _
    $region33: #{tpu_custom_call.1} parent=1 // pred_fallthru
      _
    %70 = vsyncpa [#allocation5], 1

</llo_original>
